<compile_context>
chip_gen: v5e
topology: v5e:2x2
jax: 0.10.0
libtpu: 0.0.40
codegen_flags: <defaults>
</compile_context>

<pallas_src>
import functools

import jax
import jax.numpy as jnp
from jax.experimental import pallas as pl
from jax.experimental.pallas import tpu as pltpu


def _round_up(n, m):
    return ((n + m - 1) // m) * m


def _device_kind():
    try:
        return jax.devices()[0].device_kind.lower()
    except Exception:  # pragma: no cover - no device visible at trace time
        return ""


def _batch_dim_semantics(num_steps):
    """Batch axis semantics: real 2-TC split on v7x, plain parallel elsewhere."""
    kind = _device_kind()
    if "v7" in kind and num_steps >= 2:
        # v7x has 2 TensorCores/chip; the plain "parallel" string has near-zero
        # codegen effect, CORE_PARALLEL actually shards the grid across TCs.
        return (pltpu.CORE_PARALLEL,)
    return (pltpu.PARALLEL,)


def _tanh_dtype_for(out_dtype):
    """bf16 tanh only when output is bf16 and the chip has a bf16 EUP/VPU path."""
    if out_dtype != jnp.bfloat16:
        return jnp.float32
    kind = _device_kind()
    if any(v in kind for v in ("v2", "v3", "v4", "v5")):
        return jnp.float32  # v5e and older: no bf16 VPU/EUP
    return jnp.bfloat16


def mlp_kernel(x_ref, w1_ref, b1_ref, w2_ref, b2_ref, o_ref, *, tanh_dtype):
    """Feature-major MLP tile.

    x_ref : (IN, TB)   batch on the lane axis
    w1_ref: (H, IN)
    b1_ref: (H, 1)
    w2_ref: (C, H)
    b2_ref: (C, 1)
    o_ref : (C, TB)
    """
    x = x_ref[...]                                     # (IN, TB) f32
    w1 = w1_ref[...]                                   # (H, IN)  f32

    # fc1: tiny contraction (IN == 1 in the spec) -> VPU broadcast outer
    # product instead of a 99%-zero-padded K=1 MXU pass.  Unrolled at trace
    # time for IN > 1.
    h = w1[:, 0:1] * x[0:1, :]                         # (H, TB)
    for k in range(1, x_ref.shape[0]):
        h = h + w1[:, k:k + 1] * x[k:k + 1, :]
    h = h + b1_ref[...]
    # EUP tanh; bf16 on v6e/v7x when the output is bf16 (2x EUP throughput).
    h = jnp.tanh(h.astype(tanh_dtype))                 # (H, TB)

    # fc2: (3,10)@(10,TB) is far below MXU granularity -> 10 VPU broadcast
    # FMAs per output row instead (removes MXU push/pop from the epilogue).
    # f32 (w2) * bf16/f32 (h) promotes to f32, so accumulation stays f32.
    w2 = w2_ref[...]                                   # (C, H) f32
    out = w2[:, 0:1] * h[0:1, :]                       # (C, TB) f32
    for k in range(1, w2_ref.shape[1]):
        out = out + w2[:, k:k + 1] * h[k:k + 1, :]

    o_ref[...] = (out + b2_ref[...]).astype(o_ref.dtype)


def net_forward(x, w1, b1, w2, b2, *, tb=65536, out_dtype=jnp.float32,
                feature_major_out=False):
    """Forward pass of Net.

    x : (B, IN)              (PyTorch layout)
    w1: (H, IN), b1: (H,)    fc1 params (PyTorch layout)
    w2: (C, H),  b2: (C,)    fc2 params (PyTorch layout)

    returns (B, C) in `out_dtype`, or (C, B) if feature_major_out=True.

    tb: batch tile (lane) size.  Per grid step the kernel moves only ~16*tb
    bytes of HBM traffic while paying ~0.35us of fixed pipeline overhead, so
    tb should be LARGE.  Padding-inclusive VMEM footprint is roughly
    300-350 bytes/lane (I/O double buffers + (16,tb) f32 intermediates):
      * default tb=64K  ->  ~20-24 MiB, safe everywhere,
      * v5e/v6e (128 MiB VMEM): tb up to ~128K-256K with vmem_limit raised,
      * v7x (64 MiB VMEM): keep tb <= ~128K and leave >=2 steps per core.

    out_dtype: jnp.bfloat16 halves the (C,B) writeback (the dominant HBM
    traffic) and enables bf16 tanh on v6e/v7x; f32 matches PyTorch exactly.

    feature_major_out: True returns the (C, B) kernel output directly and
    skips the trailing XLA transpose pass (which re-reads/re-writes the whole
    result); recommended when the consumer can take feature-major data.
    """
    B, IN = x.shape
    H = w1.shape[0]
    C = w2.shape[0]

    # Feature-major layout: batch on the last (lane) axis.  For IN == 1 this
    # is a free reshape ((B,1) and (1,B) share a row-major layout).
    if IN == 1:
        xt = x.reshape(1, B).astype(jnp.float32)
    else:
        # TODO(synk): for IN > 1 this transpose is a real HBM pass; accept
        # feature-major x from the producer instead if this path matters.
        xt = jnp.transpose(x).astype(jnp.float32)

    w1f = w1.astype(jnp.float32)                       # (H, IN)
    b1c = b1.reshape(H, 1).astype(jnp.float32)         # (H, 1)
    w2f = w2.astype(jnp.float32)                       # (C, H)
    b2c = b2.reshape(C, 1).astype(jnp.float32)         # (C, 1)

    # Tile the batch (lane) axis.  No padding copy: Pallas masks the ragged
    # last block itself.
    tb = max(128, min(int(tb), _round_up(B, 128)))
    tb = _round_up(tb, 128)
    num_steps = pl.cdiv(B, tb)

    kernel = functools.partial(mlp_kernel, tanh_dtype=_tanh_dtype_for(out_dtype))

    out_t = pl.pallas_call(
        kernel,
        out_shape=jax.ShapeDtypeStruct((C, B), out_dtype),
        grid=(num_steps,),
        in_specs=[
            pl.BlockSpec((IN, tb), lambda i: (0, i)),   # x tile (pipelined)
            pl.BlockSpec((H, IN), lambda i: (0, 0)),    # weights VMEM-resident
            pl.BlockSpec((H, 1), lambda i: (0, 0)),
            pl.BlockSpec((C, H), lambda i: (0, 0)),
            pl.BlockSpec((C, 1), lambda i: (0, 0)),
        ],
        out_specs=pl.BlockSpec((C, tb), lambda i: (0, i)),
        compiler_params=pltpu.CompilerParams(
            dimension_semantics=_batch_dim_semantics(num_steps),
            vmem_limit_bytes=48 * 1024 * 1024,          # < 64 MiB v7x physical
        ),
    )(xt, w1f, b1c, w2f, b2c)

    if feature_major_out:
        return out_t                                    # (C, B), no extra pass
    # (B, C) to match the PyTorch module; note this transpose is a separate
    # XLA pass that re-reads/re-writes the full output.
    return jnp.transpose(out_t)


def init_params(key, input_size, hidden_size1, num_classes):
    """nn.Linear-style init (uniform +/- 1/sqrt(fan_in)), PyTorch layout."""
    k1, k2, k3, k4 = jax.random.split(key, 4)
    bound1 = 1.0 / jnp.sqrt(jnp.float32(input_size))
    bound2 = 1.0 / jnp.sqrt(jnp.float32(hidden_size1))
    w1 = jax.random.uniform(k1, (hidden_size1, input_size), jnp.float32,
                            minval=-bound1, maxval=bound1)
    b1 = jax.random.uniform(k2, (hidden_size1,), jnp.float32,
                            minval=-bound1, maxval=bound1)
    w2 = jax.random.uniform(k3, (num_classes, hidden_size1), jnp.float32,
                            minval=-bound2, maxval=bound2)
    b2 = jax.random.uniform(k4, (num_classes,), jnp.float32,
                            minval=-bound2, maxval=bound2)
    return w1, b1, w2, b2


if __name__ == "__main__":
    input_size = 1
    hidden_size1 = 10
    num_classes = 3
    batch = 256          # small demo batch; tb=128 -> 2 grid steps

    key = jax.random.PRNGKey(0)
    kx, kp = jax.random.split(key)
    x = jax.random.normal(kx, (batch, input_size), jnp.float32)
    w1, b1, w2, b2 = init_params(kp, input_size, hidden_size1, num_classes)

    ref = jnp.tanh(x @ w1.T + b1[None, :]) @ w2.T + b2[None, :]

    # f32 path (exact match to the PyTorch-layout reference).
    out = net_forward(x, w1, b1, w2, b2, tb=128)
    out = jax.block_until_ready(out)
    assert out.shape == (batch, num_classes)
    assert jnp.allclose(out, ref, atol=1e-5, rtol=1e-5)

    # bf16 / feature-major fast path (recommended for large B): looser tol.
    out_fm = net_forward(x, w1, b1, w2, b2, tb=128,
                         out_dtype=jnp.bfloat16, feature_major_out=True)
    out_fm = jax.block_until_ready(out_fm)
    assert out_fm.shape == (num_classes, batch)
    assert jnp.allclose(jnp.transpose(out_fm.astype(jnp.float32)), ref,
                        atol=5e-2, rtol=5e-2)

    print("KERNEL_OK")
</pallas_src>

<mosaic_0001>
module attributes {stable_mosaic.version = 11 : i64} {
  func.func @mlp_kernel(%arg0: i32, %arg1: memref<1x128xf32, #tpu.memory_space<vmem>>, %arg2: memref<10x1xf32, #tpu.memory_space<vmem>>, %arg3: memref<10x1xf32, #tpu.memory_space<vmem>>, %arg4: memref<3x10xf32, #tpu.memory_space<vmem>>, %arg5: memref<3x1xf32, #tpu.memory_space<vmem>>, %arg6: memref<3x128xf32, #tpu.memory_space<vmem>>) attributes {dimension_semantics = [#tpu.dimension_semantics<parallel>], iteration_bounds = array<i64: 2>, scalar_prefetch = 0 : i64, scratch_operands = 0 : i64, tpu.core_type = #tpu.core_type<tc>, window_params = [{transform_indices = @transform_0, window_bounds = array<i64: 1, 128>}, {pipeline_mode = #tpu.pipeline_mode<synchronous>, transform_indices = @transform_1, window_bounds = array<i64: 10, 1>}, {pipeline_mode = #tpu.pipeline_mode<synchronous>, transform_indices = @transform_2, window_bounds = array<i64: 10, 1>}, {pipeline_mode = #tpu.pipeline_mode<synchronous>, transform_indices = @transform_3, window_bounds = array<i64: 3, 10>}, {pipeline_mode = #tpu.pipeline_mode<synchronous>, transform_indices = @transform_4, window_bounds = array<i64: 3, 1>}, {transform_indices = @transform_5, window_bounds = array<i64: 3, 128>}]} {
    %c0 = arith.constant 0 : index
    %c0_0 = arith.constant 0 : index
    %0 = vector.load %arg1[%c0, %c0_0] : memref<1x128xf32, #tpu.memory_space<vmem>>, vector<1x128xf32>
    %c0_1 = arith.constant 0 : index
    %c0_2 = arith.constant 0 : index
    %1 = vector.load %arg2[%c0_1, %c0_2] : memref<10x1xf32, #tpu.memory_space<vmem>>, vector<10x1xf32>
    %2 = vector.broadcast %1 : vector<10x1xf32> to vector<10x128xf32>
    %3 = vector.broadcast %0 : vector<1x128xf32> to vector<10x128xf32>
    %4 = arith.mulf %2, %3 : vector<10x128xf32>
    %c0_3 = arith.constant 0 : index
    %c0_4 = arith.constant 0 : index
    %5 = vector.load %arg3[%c0_3, %c0_4] : memref<10x1xf32, #tpu.memory_space<vmem>>, vector<10x1xf32>
    %6 = vector.broadcast %5 : vector<10x1xf32> to vector<10x128xf32>
    %7 = arith.addf %4, %6 : vector<10x128xf32>
    %8 = math.tanh %7 : vector<10x128xf32>
    %c0_5 = arith.constant 0 : index
    %c0_6 = arith.constant 0 : index
    %9 = vector.load %arg4[%c0_5, %c0_6] : memref<3x10xf32, #tpu.memory_space<vmem>>, vector<3x10xf32>
    %10 = vector.extract_strided_slice %9 {offsets = [0, 0], sizes = [3, 1], strides = [1, 1]} : vector<3x10xf32> to vector<3x1xf32>
    %11 = vector.extract_strided_slice %8 {offsets = [0, 0], sizes = [1, 128], strides = [1, 1]} : vector<10x128xf32> to vector<1x128xf32>
    %12 = vector.broadcast %10 : vector<3x1xf32> to vector<3x128xf32>
    %13 = vector.broadcast %11 : vector<1x128xf32> to vector<3x128xf32>
    %14 = arith.mulf %12, %13 : vector<3x128xf32>
    %15 = vector.extract_strided_slice %9 {offsets = [0, 1], sizes = [3, 1], strides = [1, 1]} : vector<3x10xf32> to vector<3x1xf32>
    %16 = vector.extract_strided_slice %8 {offsets = [1, 0], sizes = [1, 128], strides = [1, 1]} : vector<10x128xf32> to vector<1x128xf32>
    %17 = vector.broadcast %15 : vector<3x1xf32> to vector<3x128xf32>
    %18 = vector.broadcast %16 : vector<1x128xf32> to vector<3x128xf32>
    %19 = arith.mulf %17, %18 : vector<3x128xf32>
    %20 = arith.addf %14, %19 : vector<3x128xf32>
    %21 = vector.extract_strided_slice %9 {offsets = [0, 2], sizes = [3, 1], strides = [1, 1]} : vector<3x10xf32> to vector<3x1xf32>
    %22 = vector.extract_strided_slice %8 {offsets = [2, 0], sizes = [1, 128], strides = [1, 1]} : vector<10x128xf32> to vector<1x128xf32>
    %23 = vector.broadcast %21 : vector<3x1xf32> to vector<3x128xf32>
    %24 = vector.broadcast %22 : vector<1x128xf32> to vector<3x128xf32>
    %25 = arith.mulf %23, %24 : vector<3x128xf32>
    %26 = arith.addf %20, %25 : vector<3x128xf32>
    %27 = vector.extract_strided_slice %9 {offsets = [0, 3], sizes = [3, 1], strides = [1, 1]} : vector<3x10xf32> to vector<3x1xf32>
    %28 = vector.extract_strided_slice %8 {offsets = [3, 0], sizes = [1, 128], strides = [1, 1]} : vector<10x128xf32> to vector<1x128xf32>
    %29 = vector.broadcast %27 : vector<3x1xf32> to vector<3x128xf32>
    %30 = vector.broadcast %28 : vector<1x128xf32> to vector<3x128xf32>
    %31 = arith.mulf %29, %30 : vector<3x128xf32>
    %32 = arith.addf %26, %31 : vector<3x128xf32>
    %33 = vector.extract_strided_slice %9 {offsets = [0, 4], sizes = [3, 1], strides = [1, 1]} : vector<3x10xf32> to vector<3x1xf32>
    %34 = vector.extract_strided_slice %8 {offsets = [4, 0], sizes = [1, 128], strides = [1, 1]} : vector<10x128xf32> to vector<1x128xf32>
    %35 = vector.broadcast %33 : vector<3x1xf32> to vector<3x128xf32>
    %36 = vector.broadcast %34 : vector<1x128xf32> to vector<3x128xf32>
    %37 = arith.mulf %35, %36 : vector<3x128xf32>
    %38 = arith.addf %32, %37 : vector<3x128xf32>
    %39 = vector.extract_strided_slice %9 {offsets = [0, 5], sizes = [3, 1], strides = [1, 1]} : vector<3x10xf32> to vector<3x1xf32>
    %40 = vector.extract_strided_slice %8 {offsets = [5, 0], sizes = [1, 128], strides = [1, 1]} : vector<10x128xf32> to vector<1x128xf32>
    %41 = vector.broadcast %39 : vector<3x1xf32> to vector<3x128xf32>
    %42 = vector.broadcast %40 : vector<1x128xf32> to vector<3x128xf32>
    %43 = arith.mulf %41, %42 : vector<3x128xf32>
    %44 = arith.addf %38, %43 : vector<3x128xf32>
    %45 = vector.extract_strided_slice %9 {offsets = [0, 6], sizes = [3, 1], strides = [1, 1]} : vector<3x10xf32> to vector<3x1xf32>
    %46 = vector.extract_strided_slice %8 {offsets = [6, 0], sizes = [1, 128], strides = [1, 1]} : vector<10x128xf32> to vector<1x128xf32>
    %47 = vector.broadcast %45 : vector<3x1xf32> to vector<3x128xf32>
    %48 = vector.broadcast %46 : vector<1x128xf32> to vector<3x128xf32>
    %49 = arith.mulf %47, %48 : vector<3x128xf32>
    %50 = arith.addf %44, %49 : vector<3x128xf32>
    %51 = vector.extract_strided_slice %9 {offsets = [0, 7], sizes = [3, 1], strides = [1, 1]} : vector<3x10xf32> to vector<3x1xf32>
    %52 = vector.extract_strided_slice %8 {offsets = [7, 0], sizes = [1, 128], strides = [1, 1]} : vector<10x128xf32> to vector<1x128xf32>
    %53 = vector.broadcast %51 : vector<3x1xf32> to vector<3x128xf32>
    %54 = vector.broadcast %52 : vector<1x128xf32> to vector<3x128xf32>
    %55 = arith.mulf %53, %54 : vector<3x128xf32>
    %56 = arith.addf %50, %55 : vector<3x128xf32>
    %57 = vector.extract_strided_slice %9 {offsets = [0, 8], sizes = [3, 1], strides = [1, 1]} : vector<3x10xf32> to vector<3x1xf32>
    %58 = vector.extract_strided_slice %8 {offsets = [8, 0], sizes = [1, 128], strides = [1, 1]} : vector<10x128xf32> to vector<1x128xf32>
    %59 = vector.broadcast %57 : vector<3x1xf32> to vector<3x128xf32>
    %60 = vector.broadcast %58 : vector<1x128xf32> to vector<3x128xf32>
    %61 = arith.mulf %59, %60 : vector<3x128xf32>
    %62 = arith.addf %56, %61 : vector<3x128xf32>
    %63 = vector.extract_strided_slice %9 {offsets = [0, 9], sizes = [3, 1], strides = [1, 1]} : vector<3x10xf32> to vector<3x1xf32>
    %64 = vector.extract_strided_slice %8 {offsets = [9, 0], sizes = [1, 128], strides = [1, 1]} : vector<10x128xf32> to vector<1x128xf32>
    %65 = vector.broadcast %63 : vector<3x1xf32> to vector<3x128xf32>
    %66 = vector.broadcast %64 : vector<1x128xf32> to vector<3x128xf32>
    %67 = arith.mulf %65, %66 : vector<3x128xf32>
    %68 = arith.addf %62, %67 : vector<3x128xf32>
    %c0_7 = arith.constant 0 : index
    %c0_8 = arith.constant 0 : index
    %69 = vector.load %arg5[%c0_7, %c0_8] : memref<3x1xf32, #tpu.memory_space<vmem>>, vector<3x1xf32>
    %70 = vector.broadcast %69 : vector<3x1xf32> to vector<3x128xf32>
    %71 = arith.addf %68, %70 : vector<3x128xf32>
    %c0_9 = arith.constant 0 : index
    %c0_10 = arith.constant 0 : index
    %72 = vector.load %arg6[%c0_9, %c0_10] : memref<3x128xf32, #tpu.memory_space<vmem>>, vector<3x128xf32>
    tpu.vector_store %arg6[%c0_9, %c0_10], %71 {strides = array<i32>} : memref<3x128xf32, #tpu.memory_space<vmem>>, vector<3x128xf32>,
    return
  }
  func.func @transform_0(%arg0: i32) -> (i32, i32) {
    %c0_i32 = arith.constant 0 : i32
    %c0_i32_0 = arith.constant 0 : i32
    return %c0_i32, %arg0 : i32, i32
  }
  func.func @transform_1(%arg0: i32) -> (i32, i32) {
    %c0_i32 = arith.constant 0 : i32
    %c0_i32_0 = arith.constant 0 : i32
    %c0_i32_1 = arith.constant 0 : i32
    return %c0_i32, %c0_i32_0 : i32, i32
  }
  func.func @transform_2(%arg0: i32) -> (i32, i32) {
    %c0_i32 = arith.constant 0 : i32
    %c0_i32_0 = arith.constant 0 : i32
    %c0_i32_1 = arith.constant 0 : i32
    return %c0_i32, %c0_i32_0 : i32, i32
  }
  func.func @transform_3(%arg0: i32) -> (i32, i32) {
    %c0_i32 = arith.constant 0 : i32
    %c0_i32_0 = arith.constant 0 : i32
    %c0_i32_1 = arith.constant 0 : i32
    return %c0_i32, %c0_i32_0 : i32, i32
  }
  func.func @transform_4(%arg0: i32) -> (i32, i32) {
    %c0_i32 = arith.constant 0 : i32
    %c0_i32_0 = arith.constant 0 : i32
    %c0_i32_1 = arith.constant 0 : i32
    return %c0_i32, %c0_i32_0 : i32, i32
  }
  func.func @transform_5(%arg0: i32) -> (i32, i32) {
    %c0_i32 = arith.constant 0 : i32
    %c0_i32_0 = arith.constant 0 : i32
    return %c0_i32, %arg0 : i32, i32
  }
}

</mosaic_0001>

<llo_original>
// kernel: tpu_custom_call.1
$region0: #{tpu_custom_call.1}
  #allocation0 [shape = 'u32[]', space=smem, size = 0x4, offset = 0x4, fixed_abs, tag = 'smem constant byte address 0x4 - core index']
  #allocation1 [shape = 'u32[72,128]{1,0:T(1,128)}', space=vmem, size = 0x9000, scoped, tag = 'internal scratch']
  %s0 = inlined_call_operand.vmem [shape: f32[1,256], index: 0, kind: input, shape index: {}]
  %s1 = inlined_call_operand.vmem [shape: f32[10,1], index: 1, kind: input, shape index: {}]
  %s2 = inlined_call_operand.vmem [shape: f32[10,1], index: 2, kind: input, shape index: {}]
  %s3 = inlined_call_operand.vmem [shape: f32[3,10], index: 3, kind: input, shape index: {}]
  %s4 = inlined_call_operand.vmem [shape: f32[3,1], index: 4, kind: input, shape index: {}]
  %s5 = inlined_call_operand.hbm [shape: f32[3,256], index: 5, kind: output, shape index: {}]
  %s6 = sld [smem:[#allocation0]]
  $region53: #{tpu_custom_call.1} parent=0
    _
  %s8 = ssub.s32 1, %s6
  %s9 = scalar_select 0, %s8, %s6
  $region1: #{tpu_custom_call.1} parent=0
    #allocation2 [shape = 'u8[4096]{0}', space=vmem, size = 0x1000, scoped, tag = 'output window, operand 0']
    #allocation3 [shape = 's32[2]{0}', space=sflag, size = 0x8, scoped, tag = 'scoped memory for tpu_custom_call.1']
    %10 = vsyncpa [#allocation3], 0
    %s11 = scalar_lea.sflag [#allocation3], 1
    %12 = vsyncpa %s11, 0
    loop: start=0, step=1, limit=4
    $region2: #{tpu_custom_call.1} parent=1 // loop_pre_header
      _
    $region3: #{tpu_custom_call.1} parent=1 // loop_header
      %s14 = sphi 0, %s18
      %p15 = scmp.ge.s32.totalorder %s14, 4
      %s24 = sphi 0, %s26
      %s27 = sphi 0, %s24
      %s28 = sphi 0, %s27
      %s44 = sphi 0, %s28
      %s48 = sphi 0, %s48
      %s50 = sphi 0, %s48
      %s51 = sphi 0, %s50
      %s65 = sphi 0, %s51
      %s69 = sphi 0, %s69
      %s71 = sphi 0, %s69
      %s72 = sphi 0, %s71
      %s86 = sphi 0, %s72
      %s90 = sphi 0, %s90
      %s92 = sphi 0, %s90
      %s93 = sphi 0, %s92
      %s107 = sphi 0, %s93
      %s111 = sphi 0, %s111
      %s113 = sphi 0, %s111
      %s114 = sphi 0, %s113
      %s128 = sphi 0, %s114
      %s134 = sphi 0, %s136
      %s137 = sphi 0, %s134
      %s138 = sphi 0, %s137
      %s154 = sphi 0, %s138
    $region4: #{tpu_custom_call.1} parent=1 // loop_header_branch
      %17 = sbr.rel (%p15) target = $region8
    $region5: #{tpu_custom_call.1} parent=1 // loop_body
      %s19 = ssub.s32 %s14, 1
      %s20 = ssub.s32 %s14, 2
      %s21 = sadd.s32 %s14, 1
      %s22 = ssub.s32 %s14, %s21
      %p23 = scmp.eq.s32.totalorder %s22, 0
      %s25 = sadd.s32 %s24, 1
      %s26 = scalar_select %p23, %s24, %s25
      %p29 = pneg %p23
      %p30 = scmp.eq.s32.totalorder %s14, 1
      %p31 = por %p29, %p30
      %p32 = scmp.ne.s32.totalorder %s24, %s27
      %p33 = scmp.eq.s32.totalorder %s14, 0
      %p34 = por %p32, %p33
      %p35 = scmp.ne.s32.totalorder %s24, %s27
      %p36 = scmp.eq.s32.totalorder %s19, 1
      %p37 = por %p35, %p36
      %p38 = scmp.ne.s32.totalorder %s27, %s28
      %p39 = scmp.eq.s32.totalorder %s19, 0
      %p40 = por %p38, %p39
      %p41 = scmp.ne.s32.totalorder %s27, %s28
      %p42 = scmp.eq.s32.totalorder %s20, 1
      %p43 = por %p41, %p42
      %p45 = scmp.ne.s32.totalorder %s28, %s44
      %p46 = scmp.eq.s32.totalorder %s20, 0
      %p47 = por %p45, %p46
      %s49 = sadd.s32 %s48, 1
      %p52 = scmp.eq.s32.totalorder %s14, 1
      %p53 = scmp.ne.s32.totalorder %s48, %s50
      %p54 = scmp.eq.s32.totalorder %s14, 0
      %p55 = por %p53, %p54
      %p56 = scmp.ne.s32.totalorder %s48, %s50
      %p57 = scmp.eq.s32.totalorder %s19, 1
      %p58 = por %p56, %p57
      %p59 = scmp.ne.s32.totalorder %s50, %s51
      %p60 = scmp.eq.s32.totalorder %s19, 0
      %p61 = por %p59, %p60
      %p62 = scmp.ne.s32.totalorder %s50, %s51
      %p63 = scmp.eq.s32.totalorder %s20, 1
      %p64 = por %p62, %p63
      %p66 = scmp.ne.s32.totalorder %s51, %s65
      %p67 = scmp.eq.s32.totalorder %s20, 0
      %p68 = por %p66, %p67
      %s70 = sadd.s32 %s69, 1
      %p73 = scmp.eq.s32.totalorder %s14, 1
      %p74 = scmp.ne.s32.totalorder %s69, %s71
      %p75 = scmp.eq.s32.totalorder %s14, 0
      %p76 = por %p74, %p75
      %p77 = scmp.ne.s32.totalorder %s69, %s71
      %p78 = scmp.eq.s32.totalorder %s19, 1
      %p79 = por %p77, %p78
      %p80 = scmp.ne.s32.totalorder %s71, %s72
      %p81 = scmp.eq.s32.totalorder %s19, 0
      %p82 = por %p80, %p81
      %p83 = scmp.ne.s32.totalorder %s71, %s72
      %p84 = scmp.eq.s32.totalorder %s20, 1
      %p85 = por %p83, %p84
      %p87 = scmp.ne.s32.totalorder %s72, %s86
      %p88 = scmp.eq.s32.totalorder %s20, 0
      %p89 = por %p87, %p88
      %s91 = sadd.s32 %s90, 1
      %p94 = scmp.eq.s32.totalorder %s14, 1
      %p95 = scmp.ne.s32.totalorder %s90, %s92
      %p96 = scmp.eq.s32.totalorder %s14, 0
      %p97 = por %p95, %p96
      %p98 = scmp.ne.s32.totalorder %s90, %s92
      %p99 = scmp.eq.s32.totalorder %s19, 1
      %p100 = por %p98, %p99
      %p101 = scmp.ne.s32.totalorder %s92, %s93
      %p102 = scmp.eq.s32.totalorder %s19, 0
      %p103 = por %p101, %p102
      %p104 = scmp.ne.s32.totalorder %s92, %s93
      %p105 = scmp.eq.s32.totalorder %s20, 1
      %p106 = por %p104, %p105
      %p108 = scmp.ne.s32.totalorder %s93, %s107
      %p109 = scmp.eq.s32.totalorder %s20, 0
      %p110 = por %p108, %p109
      %s112 = sadd.s32 %s111, 1
      %p115 = scmp.eq.s32.totalorder %s14, 1
      %p116 = scmp.ne.s32.totalorder %s111, %s113
      %p117 = scmp.eq.s32.totalorder %s14, 0
      %p118 = por %p116, %p117
      %p119 = scmp.ne.s32.totalorder %s111, %s113
      %p120 = scmp.eq.s32.totalorder %s19, 1
      %p121 = por %p119, %p120
      %p122 = scmp.ne.s32.totalorder %s113, %s114
      %p123 = scmp.eq.s32.totalorder %s19, 0
      %p124 = por %p122, %p123
      %p125 = scmp.ne.s32.totalorder %s113, %s114
      %p126 = scmp.eq.s32.totalorder %s20, 1
      %p127 = por %p125, %p126
      %p129 = scmp.ne.s32.totalorder %s114, %s128
      %p130 = scmp.eq.s32.totalorder %s20, 0
      %p131 = por %p129, %p130
      %s132 = ssub.s32 %s14, %s21
      %p133 = scmp.eq.s32.totalorder %s132, 0
      %s135 = sadd.s32 %s134, 1
      %s136 = scalar_select %p133, %s134, %s135
      %p139 = pneg %p133
      %p140 = scmp.eq.s32.totalorder %s14, 1
      %p141 = por %p139, %p140
      %p142 = scmp.ne.s32.totalorder %s134, %s137
      %p143 = scmp.eq.s32.totalorder %s14, 0
      %p144 = por %p142, %p143
      %p145 = scmp.ne.s32.totalorder %s134, %s137
      %p146 = scmp.eq.s32.totalorder %s19, 1
      %p147 = por %p145, %p146
      %p148 = scmp.ne.s32.totalorder %s137, %s138
      %p149 = scmp.eq.s32.totalorder %s19, 0
      %p150 = por %p148, %p149
      %p151 = scmp.ne.s32.totalorder %s137, %s138
      %p152 = scmp.eq.s32.totalorder %s20, 1
      %p153 = por %p151, %p152
      %p155 = scmp.ne.s32.totalorder %s138, %s154
      %p156 = scmp.eq.s32.totalorder %s20, 0
      %p157 = por %p155, %p156
      %p158 = scmp.le.s32.totalorder 1, %s14
      %p159 = scmp.lt.s32.totalorder %s14, 3
      %p160 = pnand %p158, %p159
      %p161 = pneg %p160
      // Predicated region
      $region9: #{tpu_custom_call.1} parent=5 // pred_check
        _
      $region10: #{tpu_custom_call.1} parent=5 // pred_check_branch
        %163 = sbr.rel (%p160) target = $region12
      $region11: #{tpu_custom_call.1} parent=5 // pred_region
        %s164 = ssub.s32 %s14, 1
        // Predicated region
        $region13: #{tpu_custom_call.1} parent=11 // pred_check
          %p165 = pneg %p61
        $region14: #{tpu_custom_call.1} parent=11 // pred_check_branch
          %167 = sbr.rel (%p165) target = $region16
        $region15: #{tpu_custom_call.1} parent=11 // pred_region
          _
        $region16: #{tpu_custom_call.1} parent=11 // pred_fallthru
          _
        // Predicated region
        $region17: #{tpu_custom_call.1} parent=11 // pred_check
          %p168 = pneg %p82
        $region18: #{tpu_custom_call.1} parent=11 // pred_check_branch
          %170 = sbr.rel (%p168) target = $region20
        $region19: #{tpu_custom_call.1} parent=11 // pred_region
          _
        $region20: #{tpu_custom_call.1} parent=11 // pred_fallthru
          _
        // Predicated region
        $region21: #{tpu_custom_call.1} parent=11 // pred_check
          %p171 = pneg %p103
        $region22: #{tpu_custom_call.1} parent=11 // pred_check_branch
          %173 = sbr.rel (%p171) target = $region24
        $region23: #{tpu_custom_call.1} parent=11 // pred_region
          _
        $region24: #{tpu_custom_call.1} parent=11 // pred_fallthru
          _
        // Predicated region
        $region25: #{tpu_custom_call.1} parent=11 // pred_check
          %p174 = pneg %p124
        $region26: #{tpu_custom_call.1} parent=11 // pred_check_branch
          %176 = sbr.rel (%p174) target = $region28
        $region27: #{tpu_custom_call.1} parent=11 // pred_region
          _
        $region28: #{tpu_custom_call.1} parent=11 // pred_fallthru
          _
      $region12: #{tpu_custom_call.1} parent=5 // pred_fallthru
        _
      %p177 = scmp.lt.s32.totalorder %s14, 2
      // Predicated region
      $region29: #{tpu_custom_call.1} parent=5 // pred_check
        %p178 = pneg %p177
      $region30: #{tpu_custom_call.1} parent=5 // pred_check_branch
        %180 = sbr.rel (%p178) target = $region32
      $region31: #{tpu_custom_call.1} parent=5 // pred_region
        // Predicated region
        $region33: #{tpu_custom_call.1} parent=31 // pred_check
          %p181 = pneg %p34
        $region34: #{tpu_custom_call.1} parent=31 // pred_check_branch
          %183 = sbr.rel (%p181) target = $region36
        $region35: #{tpu_custom_call.1} parent=31 // pred_region
          %p184 = scmp.lt.s32.totalorder %s14, 1
          %s185 = scalar_select %p184, %s14, 1
          %s186 = scalar_lea.vmem %s0, %s185
        $region36: #{tpu_custom_call.1} parent=31 // pred_fallthru
          _
      $region32: #{tpu_custom_call.1} parent=5 // pred_fallthru
        _
      %p187 = scmp.le.s32.totalorder 1, %s14
      %p188 = scmp.lt.s32.totalorder %s14, 3
      %p189 = pnand %p187, %p188
      %p190 = pneg %p189
      // Predicated region
      $region37: #{tpu_custom_call.1} parent=5 // pred_check
        _
      $region38: #{tpu_custom_call.1} parent=5 // pred_check_branch
        %192 = sbr.rel (%p189) target = $region40
      $region39: #{tpu_custom_call.1} parent=5 // pred_region
        %s193 = ssub.s32 %s14, 1
        %p194 = scmp.lt.s32.totalorder %s19, 1
        %s195 = scalar_select %p194, %s19, 1
        %s196 = scalar_lea.vmem %s0, %s195
        %p197 = pneg %p40
        %p198 = pneg %p37
        %p199 = pneg %p61
        %p200 = pneg %p58
        %p201 = pneg %p82
        %p202 = pneg %p79
        %p203 = pneg %p103
        %p204 = pneg %p100
        %p205 = pneg %p124
        %p206 = pneg %p121
        %p207 = pneg %p150
        %p208 = pneg %p147
        %s209 = sand.u32 %s137, 1
        %s210 = scalar_lea.sflag [#allocation3], %s209
        %s211 = sand.u32 %s137, 1
        %s212 = smul.addr %s211, 4
        %s213 = scalar_lea.vmem [#allocation2], %s212
        %p214 = scmp.lt.s32.totalorder %s19, 1
        %s215 = scalar_select %p214, %s19, 1
        %s216 = scalar_lea.vmem %s0, %s215
        %v217 = vld [vmem:[%s216] sm:$0x1]
        %v218 = vld [vmem:[%s1] sm:$0xff]
        %v219 = vld [vmem:[%s1 + $0x8] sm:$0x3]
        %221 = vset.pattern.permute.xlu0 0
        %222 = vperm.xlu0 %221, %v218
        %v223 = vpop.permute.xlu0 %222
        %226 = vset.pattern.permute.xlu0 0
        %227 = vperm.xlu0 %226, %v219
        %v228 = vpop.permute.xlu0 %227
        %v231 = vperm.slane %v217, 0
        %v233 = vmul.f32 %v223, %v231
        %v234 = vmul.f32 %v228, %v231
        %v235 = vld [vmem:[%s2] sm:$0xff]
        %v236 = vld [vmem:[%s2 + $0x8] sm:$0x3]
        %238 = vset.pattern.permute.xlu0 0
        %239 = vperm.xlu0 %238, %v235
        %v240 = vpop.permute.xlu0 %239
        %243 = vset.pattern.permute.xlu0 0
        %244 = vperm.xlu0 %243, %v236
        %v245 = vpop.permute.xlu0 %244
        %v247 = vadd.f32 %v233, %v240
        %v248 = vadd.f32 %v234, %v245
        %v249 = vtanh.pop %v247
        %v250 = vtanh.pop %v248
        %v251 = vld [vmem:[%s3] sm:$0x7]
        %253 = vset.pattern.permute.xlu0 0
        %254 = vperm.xlu0 %253, %v251
        %v255 = vpop.permute.xlu0 %254
        %v257 = vperm.slane %v249, 0
        %v258 = vmul.f32 %v255, %v257
        %259 = vset.pattern.permute.xlu0 1
        %260 = vperm.xlu0 %259, %v251
        %v261 = vpop.permute.xlu0 %260
        %v263 = vperm.slane %v249, 1
        %v264 = vmul.f32 %v261, %v263
        %v265 = vadd.f32 %v258, %v264
        %266 = vset.pattern.permute.xlu0 2
        %267 = vperm.xlu0 %266, %v251
        %v268 = vpop.permute.xlu0 %267
        %v270 = vperm.slane %v249, 2
        %v271 = vmul.f32 %v268, %v270
        %v272 = vadd.f32 %v265, %v271
        %273 = vset.pattern.permute.xlu0 3
        %274 = vperm.xlu0 %273, %v251
        %v275 = vpop.permute.xlu0 %274
        %v277 = vperm.slane %v249, 3
        %v278 = vmul.f32 %v275, %v277
        %v279 = vadd.f32 %v272, %v278
        %280 = vset.pattern.permute.xlu0 4
        %281 = vperm.xlu0 %280, %v251
        %v282 = vpop.permute.xlu0 %281
        %v284 = vperm.slane %v249, 4
        %v285 = vmul.f32 %v282, %v284
        %v286 = vadd.f32 %v279, %v285
        %287 = vset.pattern.permute.xlu0 5
        %288 = vperm.xlu0 %287, %v251
        %v289 = vpop.permute.xlu0 %288
        %v291 = vperm.slane %v249, 5
        %v292 = vmul.f32 %v289, %v291
        %v293 = vadd.f32 %v286, %v292
        %294 = vset.pattern.permute.xlu0 6
        %295 = vperm.xlu0 %294, %v251
        %v296 = vpop.permute.xlu0 %295
        %v298 = vperm.slane %v249, 6
        %v299 = vmul.f32 %v296, %v298
        %v300 = vadd.f32 %v293, %v299
        %301 = vset.pattern.permute.xlu0 7
        %302 = vperm.xlu0 %301, %v251
        %v303 = vpop.permute.xlu0 %302
        %v305 = vperm.slane %v249, 7
        %v306 = vmul.f32 %v303, %v305
        %v307 = vadd.f32 %v300, %v306
        %308 = vset.pattern.permute.xlu0 8
        %309 = vperm.xlu0 %308, %v251
        %v310 = vpop.permute.xlu0 %309
        %v312 = vperm.slane %v250, 0
        %v313 = vmul.f32 %v310, %v312
        %v314 = vadd.f32 %v307, %v313
        %315 = vset.pattern.permute.xlu0 9
        %316 = vperm.xlu0 %315, %v251
        %v317 = vpop.permute.xlu0 %316
        %v319 = vperm.slane %v250, 1
        %v320 = vmul.f32 %v317, %v319
        %v321 = vadd.f32 %v314, %v320
        %v322 = vld [vmem:[%s4] sm:$0x7]
        %324 = vset.pattern.permute.xlu0 0
        %325 = vperm.xlu0 %324, %v322
        %v326 = vpop.permute.xlu0 %325
        %v328 = vadd.f32 %v321, %v326
        %329 = vst [vmem:[%s213] sm:$0x7] %v328
        %s330 = sand.u32 %s137, 1
        %s331 = scalar_lea.sflag [#allocation3], %s330
        %s332 = sand.u32 %s137, 1
        %s333 = smul.addr %s332, 4
        %s334 = scalar_lea.vmem [#allocation2], %s333
        // Predicated region
        $region41: #{tpu_custom_call.1} parent=39 // pred_check
          %p335 = pneg %p147
        $region42: #{tpu_custom_call.1} parent=39 // pred_check_branch
          %337 = sbr.rel (%p335) target = $region44
        $region43: #{tpu_custom_call.1} parent=39 // pred_region
          %339 = vsyncadd %s331, 0
          %s340 = smul.addr %s19, 4
          %s341 = scalar_lea.hbm %s5, %s340
          %s343 = sshll.u32 %s334, 4
          %s344 = int_to_ptr.vmem [resolvable:$true] %s343
          %s345 = sshll.u32 %s341, 4
          %s346 = int_to_ptr.hbm [resolvable:$true] %s345
          %348 = dma.vmem_to_hbm [thread:$0]  %s344, 64, %s346, %s331
        $region44: #{tpu_custom_call.1} parent=39 // pred_fallthru
          _
      $region40: #{tpu_custom_call.1} parent=5 // pred_fallthru
        _
      %p349 = scmp.le.s32.totalorder 2, %s14
      // Predicated region
      $region45: #{tpu_custom_call.1} parent=5 // pred_check
        %p350 = pneg %p349
      $region46: #{tpu_custom_call.1} parent=5 // pred_check_branch
        %352 = sbr.rel (%p350) target = $region48
      $region47: #{tpu_custom_call.1} parent=5 // pred_region
        %s353 = ssub.s32 %s14, 2
        // Predicated region
        $region49: #{tpu_custom_call.1} parent=47 // pred_check
          %p354 = pneg %p153
        $region50: #{tpu_custom_call.1} parent=47 // pred_check_branch
          %356 = sbr.rel (%p354) target = $region52
        $region51: #{tpu_custom_call.1} parent=47 // pred_region
          %s357 = sand.u32 %s138, 1
          %s358 = scalar_lea.sflag [#allocation3], %s357
          %s359 = sand.u32 %s138, 1
          %s360 = smul.addr %s359, 4
          %s361 = scalar_lea.vmem [#allocation2], %s360
          %363 = dma.done %s358, 64
        $region52: #{tpu_custom_call.1} parent=47 // pred_fallthru
          _
      $region48: #{tpu_custom_call.1} parent=5 // pred_fallthru
        _
    $region6: #{tpu_custom_call.1} parent=1 // loop_footer
      %s18 = sadd.s32 1, %s14
    $region7: #{tpu_custom_call.1} parent=1 // loop_footer_branch
      %13 = sbr.rel target = $region3
    $region8: #{tpu_custom_call.1} parent=1 // loop_exit
      _
    %364 = vsyncpa [#allocation3], 1
    %s365 = scalar_lea.sflag [#allocation3], 1
    %366 = vsyncpa %s365, 1

</llo_original>
